<compile_context>
chip_gen: v7x
topology: tpu7x:2x2x1
jax: 0.10.0
libtpu: 0.0.40
codegen_flags: <defaults>
</compile_context>

<pallas_src>
import math
from dataclasses import dataclass
from functools import partial

import jax
import jax.numpy as jnp
from jax.experimental import pallas as pl
from jax.experimental.pallas import tpu as pltpu


def _round_up(x, m):
    return ((x + m - 1) // m) * m


# ---------------------------------------------------------------------------
# Kernels
# ---------------------------------------------------------------------------

def _clamp(w, w_min, w_max):
    # Matches torch _keep_weight_limits order: clamp to max first, then to min.
    return jnp.maximum(jnp.minimum(w, w_max), w_min)


def _dendrite_kernel_single_k(nt_ref, w_ref, out_ref, *, w_min, w_max,
                              compute_dtype):
    """Single K block: no accumulator scratch, no pl.when branches."""
    w = _clamp(w_ref[...], w_min, w_max).astype(compute_dtype)
    nt = nt_ref[...].astype(compute_dtype)
    out_ref[...] = jnp.dot(nt, w,
                           preferred_element_type=jnp.float32).astype(out_ref.dtype)


def _dendrite_kernel_multi_k(nt_ref, w_ref, out_ref, acc_ref, *, w_min, w_max,
                             compute_dtype):
    """Multiple K blocks: f32 VMEM accumulator, init/writeback via pl.when."""
    k = pl.program_id(2)

    @pl.when(k == 0)
    def _():
        acc_ref[...] = jnp.zeros_like(acc_ref)

    # _keep_weight_limits fused on the streamed weight tile (native dtype),
    # cast to the compute dtype only after the tile is resident in VMEM.
    w = _clamp(w_ref[...], w_min, w_max).astype(compute_dtype)
    nt = nt_ref[...].astype(compute_dtype)
    acc_ref[...] += jnp.dot(nt, w, preferred_element_type=jnp.float32)

    @pl.when(k == pl.num_programs(2) - 1)
    def _():
        out_ref[...] = acc_ref[...].astype(out_ref.dtype)


# ---------------------------------------------------------------------------
# Per-generation tile planning
# ---------------------------------------------------------------------------

@dataclass(frozen=True)
class _TpuPlan:
    tk_cap: int
    tn_cap: int
    vmem_budget: int      # budget for the kernel's resident buffers
    vmem_limit_cap: int   # ceiling passed to vmem_limit_bytes
    megacore: bool        # 2 TensorCores share the grid via "parallel" axes


def _tpu_plan():
    try:
        kind = jax.devices()[0].device_kind.lower()
    except Exception:  # pragma: no cover - interpret/CPU fallback
        kind = ""
    if "v7" in kind:
        # 64 MiB physical VMEM per TC, 3.2 TB/s HBM, 2 TCs per chip.
        return _TpuPlan(2048, 2048, 40 << 20, 56 << 20, True)
    if "v6" in kind:
        return _TpuPlan(2048, 4096, 80 << 20, 100 << 20, False)
    if "v5" in kind and ("lite" in kind or "v5e" in kind):
        return _TpuPlan(2048, 4096, 80 << 20, 100 << 20, False)
    if "v5" in kind or "v4" in kind:   # v5p / v4 (megacore)
        return _TpuPlan(2048, 4096, 80 << 20, 100 << 20, True)
    # Unknown chip: conservative caps that fit the smallest VMEM (v7x, 64 MiB).
    return _TpuPlan(1024, 2048, 32 << 20, 48 << 20, False)


def _pick_dim_tile(dim, cap):
    """Pick (tile, padded_dim) for one lane axis, avoiding HBM padding when the
    dim is 128-aligned (tile = largest 128-multiple divisor <= cap) or small
    enough to live in a single full-dim block."""
    aligned = _round_up(dim, 128)
    if dim % 128 == 0:
        best, t = 128, 128
        while t <= min(cap, dim):
            if dim % t == 0:
                best = t
            t += 128
        return best, dim
    if aligned <= cap:
        return dim, dim          # full, unpadded dim as a single block
    best, t = 128, 128
    while t <= cap:
        if aligned % t == 0:
            best = t
        t += 128
    return best, aligned


# ---------------------------------------------------------------------------
# Wrapper
# ---------------------------------------------------------------------------

def dendrite_transmit_current(neurotransmitter, synaptic_weights,
                              minimum_weight=0.0, maximum_weight=1.0,
                              shape=None):
    """LinearDendrite-style transmit_current.

    neurotransmitter: (batch, *spine)
    synaptic_weights: (*spine, *shape)
    returns current:  (batch, *shape) float32
    """
    batch = neurotransmitter.shape[0]
    spine = neurotransmitter.shape[1:]
    if shape is None:
        shape = synaptic_weights.shape[len(spine):]
    K = math.prod(spine)
    N = math.prod(shape)

    # Stream both operands in their native HBM dtype (never upcast W in HBM);
    # any promotion happens on the VMEM tile inside the kernel.
    nt2d = neurotransmitter.reshape(batch, K)
    w2d = synaptic_weights.reshape(K, N)
    nt_isz = jnp.dtype(nt2d.dtype).itemsize
    w_isz = jnp.dtype(w2d.dtype).itemsize
    compute_dtype = jnp.promote_types(nt2d.dtype, w2d.dtype)

    plan = _tpu_plan()

    # M tile: sublane-aligned for the streamed nt dtype (16 rows for 2-byte
    # dtypes so vregs are fully packed); single M block when batch <= 512.
    sub = 16 if nt_isz == 2 else 8
    tm_cap = 512
    if batch <= tm_cap:
        tm = _round_up(batch, sub)
        Mp = tm
    else:
        tm = tm_cap
        Mp = _round_up(batch, tm)

    # K/N tiles: as large as the per-generation VMEM budget allows so the
    # W-tile DMA dominates the ~0.35us per-grid-step overhead.
    tk_cap, tn_cap = plan.tk_cap, plan.tn_cap
    while True:
        tk, Kp = _pick_dim_tile(K, tk_cap)
        tn, Np = _pick_dim_tile(N, tn_cap)
        need = (2 * (tm * tk * nt_isz + tk * tn * w_isz)   # double-buffered inputs
                + 2 * tm * tn * 4                          # double-buffered f32 out
                + tm * tn * 4)                             # f32 accumulator
        if need <= plan.vmem_budget or (tk_cap <= 128 and tn_cap <= 128):
            break
        if tn_cap >= tk_cap and tn_cap > 128:
            tn_cap //= 2
        elif tk_cap > 128:
            tk_cap //= 2
        else:
            tn_cap //= 2

    # Megacore chips: keep at least two "parallel" blocks so both TensorCores
    # share the dominant weight stream (split N when M has a single block).
    if plan.megacore and (Mp // tm) * (Np // tn) < 2 and _round_up(N, 128) >= 256:
        half_cap = max(128, (_round_up(N, 128) // 2) // 128 * 128)
        tn, Np = _pick_dim_tile(N, half_cap)

    # Zero padding only when unavoidable.  Padded nt columns are zero, so the
    # clamped padded weight rows contribute nothing; padded output rows/cols
    # are sliced off below.
    if (Mp, Kp) != (batch, K):
        nt2d = jnp.pad(nt2d, ((0, Mp - batch), (0, Kp - K)))
    if (Kp, Np) != (K, N):
        w2d = jnp.pad(w2d, ((0, Kp - K), (0, Np - N)))

    n_k = Kp // tk
    w_min = float(minimum_weight)
    w_max = float(maximum_weight)

    cost = pl.CostEstimate(
        flops=2 * Mp * Kp * Np,
        transcendentals=0,
        bytes_accessed=(nt_isz * Mp * Kp * (Np // tn)     # nt re-read per N block
                        + w_isz * Kp * Np * (Mp // tm)    # W re-read per M block
                        + 4 * Mp * Np),
    )
    vmem_limit = int(min(plan.vmem_limit_cap, max(need + (8 << 20), 32 << 20)))

    if n_k == 1:
        kernel = partial(_dendrite_kernel_single_k, w_min=w_min, w_max=w_max,
                         compute_dtype=compute_dtype)
        grid_spec = pltpu.PrefetchScalarGridSpec(
            num_scalar_prefetch=0,
            grid=(Mp // tm, Np // tn),
            in_specs=[
                pl.BlockSpec((tm, tk), lambda m, n: (m, 0)),  # neurotransmitter
                pl.BlockSpec((tk, tn), lambda m, n: (0, n)),  # synaptic weights
            ],
            out_specs=pl.BlockSpec((tm, tn), lambda m, n: (m, n)),
        )
        dims = ("parallel", "parallel")
    else:
        kernel = partial(_dendrite_kernel_multi_k, w_min=w_min, w_max=w_max,
                         compute_dtype=compute_dtype)
        grid_spec = pltpu.PrefetchScalarGridSpec(
            num_scalar_prefetch=0,
            grid=(Mp // tm, Np // tn, n_k),
            in_specs=[
                pl.BlockSpec((tm, tk), lambda m, n, k: (m, k)),  # neurotransmitter
                pl.BlockSpec((tk, tn), lambda m, n, k: (k, n)),  # synaptic weights
            ],
            out_specs=pl.BlockSpec((tm, tn), lambda m, n, k: (m, n)),
            scratch_shapes=[pltpu.VMEM((tm, tn), jnp.float32)],
        )
        dims = ("parallel", "parallel", "arbitrary")

    current = pl.pallas_call(
        kernel,
        out_shape=jax.ShapeDtypeStruct((Mp, Np), jnp.float32),
        grid_spec=grid_spec,
        compiler_params=pltpu.CompilerParams(
            dimension_semantics=dims,
            vmem_limit_bytes=vmem_limit),
        cost_estimate=cost,
    )(nt2d, w2d)

    # Drop lane/sublane padding, restore the dendrite-population topology.
    return current[:batch, :N].reshape(batch, *shape)


class DendriteState:
    """Plain-JAX glue mirroring Dendrite.forward()'s state bookkeeping.

    forward() just records the incoming tensors (returns None in torch); the
    compute hot path lives in the Pallas kernel above.
    """
    # TODO(synk): torch's _keep_weight_limits clamps self.weights in place;
    # persisting the clamped weights would need a second kernel output with
    # input_output_aliases.  Here the clamp is fused per call (values match).
    # TODO(synk): plasticity_model / backward / Monitor recording have no
    # Pallas-relevant compute and are not modeled here.

    def __init__(self, batch, spine, shape, weights,
                 minimum_weight=0.0, maximum_weight=1.0):
        self.batch = batch
        self.spine = tuple(spine)
        self.shape = tuple(shape)
        self.weights = weights
        self.min = minimum_weight
        self.max = maximum_weight
        self.neurotransmitter = jnp.zeros((batch, *spine), weights.dtype)
        self.neuromodulator = jnp.zeros((batch, *spine), weights.dtype)
        self.action_potential = jnp.zeros((batch, *shape), jnp.float32)

    def forward(self, neurotransmitter, neuromodulator):
        self.neurotransmitter = neurotransmitter
        self.neuromodulator = neuromodulator

    def transmit_current(self):
        return dendrite_transmit_current(
            self.neurotransmitter, self.weights,
            minimum_weight=self.min, maximum_weight=self.max,
            shape=self.shape)


if __name__ == "__main__":
    key = jax.random.PRNGKey(0)
    k_w, k_nt, k_nm, k_w2, k_nt2, k_w3, k_nt3 = jax.random.split(key, 7)

    # --- Test 1: module-sized shapes, mixed dtype (f32 nt, bf16 W) --------
    # Exercises: full-dim (unpadded) blocks, single-K kernel, in-kernel cast.
    batch, spine, shape = 2, (4, 8), (16,)
    weights = (jax.random.normal(k_w, (*spine, *shape), jnp.float32) * 1.5
               ).astype(jnp.bfloat16)
    neurotransmitter = jax.random.uniform(k_nt, (batch, *spine), jnp.float32)
    neuromodulator = jax.random.uniform(k_nm, (batch, *spine), jnp.float32)

    dendrite = DendriteState(batch, spine, shape, weights,
                             minimum_weight=0.0, maximum_weight=1.0)
    dendrite.forward(neurotransmitter, neuromodulator)
    current = jax.block_until_ready(dendrite.transmit_current())

    w_ref = jnp.clip(
        weights.astype(jnp.float32).reshape(-1, math.prod(shape)), 0.0, 1.0)
    ref = jnp.dot(neurotransmitter.reshape(batch, -1), w_ref,
                  precision=jax.lax.Precision.HIGHEST)
    assert current.shape == (batch, *shape)
    assert jnp.allclose(current.reshape(batch, -1), ref, atol=2e-2, rtol=2e-2)

    # --- Test 2: larger spine (K=1280, N=256), bf16, single-K big tile ----
    # Exercises: divisor tiling with no weight padding (K already 128-aligned),
    # and the megacore N split on 2-TC chips.
    batch2, spine2, shape2 = 8, (8, 160), (256,)
    w2 = jax.random.normal(k_w2, (*spine2, *shape2),
                           jnp.float32).astype(jnp.bfloat16)
    nt2 = jax.random.uniform(k_nt2, (batch2, *spine2),
                             jnp.float32).astype(jnp.bfloat16)
    cur2 = jax.block_until_ready(dendrite_transmit_current(
        nt2, w2, minimum_weight=-0.5, maximum_weight=0.5, shape=shape2))

    w2_ref = jnp.clip(
        w2.astype(jnp.float32).reshape(-1, math.prod(shape2)), -0.5, 0.5)
    ref2 = jnp.dot(nt2.astype(jnp.float32).reshape(batch2, -1),
                   w2_ref, precision=jax.lax.Precision.HIGHEST)
    assert cur2.shape == (batch2, *shape2)
    assert jnp.allclose(cur2.reshape(batch2, -1), ref2, atol=1e-2, rtol=1e-2)

    # --- Test 3: K=2560 -> multiple K blocks (accumulator path), bf16 -----
    batch3, spine3, shape3 = 8, (16, 160), (256,)
    w3 = jax.random.normal(k_w3, (*spine3, *shape3),
                           jnp.float32).astype(jnp.bfloat16)
    nt3 = jax.random.uniform(k_nt3, (batch3, *spine3),
                             jnp.float32).astype(jnp.bfloat16)
    cur3 = jax.block_until_ready(dendrite_transmit_current(
        nt3, w3, minimum_weight=-0.25, maximum_weight=0.75, shape=shape3))

    w3_ref = jnp.clip(
        w3.astype(jnp.float32).reshape(-1, math.prod(shape3)), -0.25, 0.75)
    ref3 = jnp.dot(nt3.astype(jnp.float32).reshape(batch3, -1),
                   w3_ref, precision=jax.lax.Precision.HIGHEST)
    assert cur3.shape == (batch3, *shape3)
    assert jnp.allclose(cur3.reshape(batch3, -1), ref3, atol=2e-2, rtol=2e-2)

    print("KERNEL_OK")
</pallas_src>

<mosaic_0001>
module attributes {stable_mosaic.version = 11 : i64} {
  func.func @_dendrite_kernel_single_k(%arg0: i32, %arg1: i32, %arg2: memref<8x32xf32, #tpu.memory_space<vmem>>, %arg3: memref<32x16xbf16, #tpu.memory_space<vmem>>, %arg4: memref<8x16xf32, #tpu.memory_space<vmem>>) attributes {dimension_semantics = [#tpu.dimension_semantics<parallel>, #tpu.dimension_semantics<parallel>], iteration_bounds = array<i64: 1, 1>, scalar_prefetch = 0 : i64, scratch_operands = 0 : i64, tpu.core_type = #tpu.core_type<tc>, window_params = [{transform_indices = @transform_0, window_bounds = array<i64: 8, 32>}, {transform_indices = @transform_1, window_bounds = array<i64: 32, 16>}, {transform_indices = @transform_2, window_bounds = array<i64: 8, 16>}]} {
    %c0 = arith.constant 0 : index
    %c0_0 = arith.constant 0 : index
    %0 = vector.load %arg3[%c0, %c0_0] : memref<32x16xbf16, #tpu.memory_space<vmem>>, vector<32x16xbf16>
    %cst = arith.constant 1.000000e+00 : bf16
    %1 = vector.broadcast %cst : bf16 to vector<32x16xbf16>
    %2 = arith.minimumf %0, %1 : vector<32x16xbf16>
    %cst_1 = arith.constant 0.000000e+00 : bf16
    %3 = vector.broadcast %cst_1 : bf16 to vector<32x16xbf16>
    %4 = arith.maximumf %2, %3 : vector<32x16xbf16>
    %5 = arith.extf %4 : vector<32x16xbf16> to vector<32x16xf32>
    %c0_2 = arith.constant 0 : index
    %c0_3 = arith.constant 0 : index
    %6 = vector.load %arg2[%c0_2, %c0_3] : memref<8x32xf32, #tpu.memory_space<vmem>>, vector<8x32xf32>
    %cst_4 = arith.constant dense<0.000000e+00> : vector<8x16xf32>
    %7 = tpu.matmul %6, %5, %cst_4 {dimension_numbers = #tpu.dot_dimension_numbers<[1], [0], [0], [1], [0, 0, 1, 1], [], []>} : vector<8x32xf32>, vector<32x16xf32>, vector<8x16xf32> -> vector<8x16xf32>
    %c0_5 = arith.constant 0 : index
    %c0_6 = arith.constant 0 : index
    %8 = vector.load %arg4[%c0_5, %c0_6] : memref<8x16xf32, #tpu.memory_space<vmem>>, vector<8x16xf32>
    tpu.vector_store %arg4[%c0_5, %c0_6], %7 {strides = array<i32>} : memref<8x16xf32, #tpu.memory_space<vmem>>, vector<8x16xf32>,
    return
  }
  func.func @transform_0(%arg0: i32, %arg1: i32) -> (i32, i32) {
    %c0_i32 = arith.constant 0 : i32
    %c0_i32_0 = arith.constant 0 : i32
    return %arg0, %c0_i32 : i32, i32
  }
  func.func @transform_1(%arg0: i32, %arg1: i32) -> (i32, i32) {
    %c0_i32 = arith.constant 0 : i32
    %c0_i32_0 = arith.constant 0 : i32
    return %c0_i32, %arg1 : i32, i32
  }
  func.func @transform_2(%arg0: i32, %arg1: i32) -> (i32, i32) {
    %c0_i32 = arith.constant 0 : i32
    return %arg0, %arg1 : i32, i32
  }
}

</mosaic_0001>

<llo_original>
// kernel: tpu_custom_call.1
$region0: #{tpu_custom_call.1}
  #allocation0 [shape = 'u32[]', space=smem, size = 0x4, offset = 0x4, fixed_abs, tag = 'smem constant byte address 0x4 - core index']
  #allocation1 [shape = 'u32[144,128]{1,0:T(1,128)}', space=vmem, size = 0x12000, scoped, tag = 'internal scratch']
  %s0 = inlined_call_operand.vmem [shape: f32[8,32], index: 0, kind: input, shape index: {}]
  %s1 = inlined_call_operand.vmem [shape: bf16[32,16], index: 1, kind: input, shape index: {}]
  %s2 = inlined_call_operand.hbm [shape: f32[8,16], index: 2, kind: output, shape index: {}]
  %s3 = sld [smem:[#allocation0]]
  $region18: #{tpu_custom_call.1} parent=0
    _
  %s5 = ssub.s32 1, %s3
  %s6 = scalar_select 0, %s5, %s3
  $region1: #{tpu_custom_call.1} parent=0
    #allocation2 [shape = 'u8[4096]{0}', space=vmem, size = 0x1000, scoped, tag = 'output window, operand 0, single buffered']
    #allocation3 [shape = 's32[1]{0}', space=sflag, size = 0x4, scoped, tag = 'scoped memory for tpu_custom_call.1']
    %7 = vsyncpa [#allocation3], 0
    // Predicated region
    $region2: #{tpu_custom_call.1} parent=1 // pred_check
      _
    $region3: #{tpu_custom_call.1} parent=1 // pred_check_branch
      %9 = sbr.rel (0) target = $region5
    $region4: #{tpu_custom_call.1} parent=1 // pred_region
      _
    $region5: #{tpu_custom_call.1} parent=1 // pred_fallthru
      _
    // Predicated region
    $region6: #{tpu_custom_call.1} parent=1 // pred_check
      _
    $region7: #{tpu_custom_call.1} parent=1 // pred_check_branch
      %11 = sbr.rel (0) target = $region9
    $region8: #{tpu_custom_call.1} parent=1 // pred_region
      _
    $region9: #{tpu_custom_call.1} parent=1 // pred_fallthru
      _
    %v14 = vld [vmem:[%s1] sm:$0xf]
    %v15 = vld [vmem:[%s1 + $0x4] sm:$0xf]
    %v16 = vld [vmem:[%s1 + $0x8] sm:$0xf]
    %v17 = vld [vmem:[%s1 + $0xc] sm:$0xf]
    %v18 = vmin.bf16 %v14, 1065369472
    %v19 = vmin.bf16 %v15, 1065369472
    %v20 = vmin.bf16 %v16, 1065369472
    %v21 = vmin.bf16 %v17, 1065369472
    %v22 = vmax.bf16 %v18, 0
    %v23 = vmax.bf16 %v19, 0
    %v24 = vmax.bf16 %v20, 0
    %v25 = vmax.bf16 %v21, 0
    %v26 = vunpack.c.l.bf16 %v22
    %v27 = vunpack.c.l.bf16 %v23
    %v28 = vunpack.c.l.bf16 %v24
    %v29 = vunpack.c.l.bf16 %v25
    %v30 = vld [vmem:[%s0] sm:$0xff]
    %vm31 = vcmask 261120
    %v33 = vsel %vm31, %v30, 0
    %35 = vmatprep.subr.mxu0 0.0
    %36 = vmatpush1.msra.mxu0 %v26
    %37 = vmatprep.subr.mxu0 0.0
    %38 = vmatpush1.msra.mxu0 %v27
    %39 = vmatprep.subr.mxu0 0.0
    %40 = vmatpush1.msra.mxu0 %v28
    %41 = vmatprep.subr.mxu0 0.0
    %42 = vmatpush1.msra.mxu0 %v29
    %43 = vmatprep.subr.mxu0 0.0
    %44 = vmatpush1.msra.mxu0 0.0
    %45 = vmatprep.subr.mxu0 0.0
    %46 = vmatpush1.msra.mxu0 0.0
    %47 = vmatprep.subr.mxu0 0.0
    %48 = vmatpush1.msra.mxu0 0.0
    %49 = vmatprep.subr.mxu0 0.0
    %50 = vmatpush1.msra.mxu0 0.0
    %51 = vmatprep.subr.mxu0 0.0
    %52 = vmatpush1.msra.mxu0 0.0
    %53 = vmatprep.subr.mxu0 0.0
    %54 = vmatpush1.msra.mxu0 0.0
    %55 = vmatprep.subr.mxu0 0.0
    %56 = vmatpush1.msra.mxu0 0.0
    %57 = vmatprep.subr.mxu0 0.0
    %58 = vmatpush1.msra.mxu0 0.0
    %59 = vmatprep.subr.mxu0 0.0
    %60 = vmatpush1.msra.mxu0 0.0
    %61 = vmatprep.subr.mxu0 0.0
    %62 = vmatpush1.msra.mxu0 0.0
    %63 = vmatprep.subr.mxu0 0.0
    %64 = vmatpush1.msra.mxu0 0.0
    %65 = vmatprep.subr.mxu0 0.0
    %66 = vmatpush1.msra.mxu0 0.0
    %67 = vmatprep.subr.mxu0 0.0
    %68 = vmatpush1.msra.mxu0 0.0
    %69 = vmatprep.subr.mxu0 0.0
    %70 = vmatpush1.msra.mxu0 0.0
    %71 = vmatprep.subr.mxu0 0.0
    %72 = vmatpush1.msra.mxu0 0.0
    %73 = vmatprep.subr.mxu0 0.0
    %74 = vmatpush1.msra.mxu0 0.0
    %75 = vmatprep.subr.mxu0 0.0
    %76 = vmatpush1.msra.mxu0 0.0
    %77 = vmatprep.subr.mxu0 0.0
    %78 = vmatpush1.msra.mxu0 0.0
    %79 = vmatprep.subr.mxu0 0.0
    %80 = vmatpush1.msra.mxu0 0.0
    %81 = vmatprep.subr.mxu0 0.0
    %82 = vmatpush1.msra.mxu0 0.0
    %83 = vmatprep.subr.mxu0 0.0
    %84 = vmatpush1.msra.mxu0 0.0
    %85 = vmatprep.subr.mxu0 0.0
    %86 = vmatpush1.msra.mxu0 0.0
    %87 = vmatprep.subr.mxu0 0.0
    %88 = vmatpush1.msra.mxu0 0.0
    %89 = vmatprep.subr.mxu0 0.0
    %90 = vmatpush1.msra.mxu0 0.0
    %91 = vmatprep.subr.mxu0 0.0
    %92 = vmatpush1.msra.mxu0 0.0
    %93 = vmatprep.subr.mxu0 0.0
    %94 = vmatpush1.msra.mxu0 0.0
    %95 = vmatprep.subr.mxu0 0.0
    %96 = vmatpush1.msra.mxu0 0.0
    %97 = vmatprep.subr.mxu0 0.0
    %98 = vmatpush1.msra.mxu0 0.0
    %99 = vmatprep.mubr.f32.mxu0 0.0
    %100 = vmatmul.mubr.f32.gmra.mrb[0].mxu0 %v33
    %v101 = vpop.f32.mrb[0].mxu0
    %v102 = vadd.f32 0.0, %v101
    %v103 = vpop.f32.mrb[0].mxu0
    %104 = vdwg.mxu0
    %vm105 = vcmask 130048
    %106 = vst.msk [vmem:[#allocation2] sm:$0xff] %vm105, %v102
    // Predicated region
    $region10: #{tpu_custom_call.1} parent=1 // pred_check
      _
    $region11: #{tpu_custom_call.1} parent=1 // pred_check_branch
      %108 = sbr.rel (0) target = $region13
    $region12: #{tpu_custom_call.1} parent=1 // pred_region
      %s110 = ssub.s32 128, 128
      %111 = vsyncadd [#allocation3], %s110
      %s113 = sshll.u32 [#allocation2], 4
      %s114 = int_to_ptr.vmem [resolvable:$true] %s113
      %116 = dma.vmem_to_hbm [thread:$0]  %s114, 128, %s2, [#allocation3]
    $region13: #{tpu_custom_call.1} parent=1 // pred_fallthru
      _
    // Predicated region
    $region14: #{tpu_custom_call.1} parent=1 // pred_check
      _
    $region15: #{tpu_custom_call.1} parent=1 // pred_check_branch
      %118 = sbr.rel (0) target = $region17
    $region16: #{tpu_custom_call.1} parent=1 // pred_region
      %119 = dma.done [#allocation3], 128
    $region17: #{tpu_custom_call.1} parent=1 // pred_fallthru
      _
    %120 = vsyncpa [#allocation3], 1

</llo_original>
